<compile_context>
chip_gen: v5e
topology: v5e:2x2
jax: 0.10.0
libtpu: 0.0.40
codegen_flags: <defaults>
</compile_context>

<pallas_src>
import jax
import jax.numpy as jnp
from jax.experimental import pallas as pl
from jax.experimental.pallas import tpu as pltpu


def se_kernel(x_ref, w1t_ref, w2t_ref, o_ref):
    # x_ref block: (Bt, C, H*W), lane-dense on the last axis.
    x = x_ref[...]                                    # input dtype
    hw = x.shape[-1]

    # --- squeeze: global average pool over the flattened spatial axis ---
    y = jnp.sum(x.astype(jnp.float32), axis=-1) * (1.0 / hw)   # (Bt, C) f32

    # --- excitation: FC -> ReLU -> FC -> sigmoid (weights pre-transposed) ---
    # Tiny (Bt, C)/(C, Cr_pad) matmuls: use full f32 precision, cost is noise
    # relative to streaming x through HBM.
    w1t = w1t_ref[...]                                # (C, Cr_pad) f32
    w2t = w2t_ref[...]                                # (Cr_pad, C) f32
    h = jnp.dot(y, w1t, precision=jax.lax.Precision.HIGHEST,
                preferred_element_type=jnp.float32)   # (Bt, Cr_pad)
    h = jnp.maximum(h, 0.0)                           # ReLU (pad lanes stay 0)
    z = jnp.dot(h, w2t, precision=jax.lax.Precision.HIGHEST,
                preferred_element_type=jnp.float32)   # (Bt, C)
    s = 1.0 / (1.0 + jnp.exp(-z))                     # exact sigmoid

    # --- scale: broadcast over the lane axis, multiply in the input dtype ---
    scale = s.astype(x.dtype)[:, :, None]             # (Bt, C, 1)
    o_ref[...] = (x * scale).astype(o_ref.dtype)


def se_layer(x, w1, w2, *, bt=None):
    """x: (B, C, H, W); w1: (C//r, C); w2: (C, C//r). Returns (B, C, H, W)."""
    B, C, H, W = x.shape
    Cr = w1.shape[0]
    assert w1.shape == (Cr, C) and w2.shape == (C, Cr)
    HW = H * W

    # Lane-dense view of the activations (contiguous, free reshape).
    x3 = x.reshape(B, C, HW)

    # Pre-transpose weights; zero-pad ONLY the hidden dim Cr up to >=128 lanes.
    cr_pad = max(128, ((Cr + 127) // 128) * 128)
    w1t = jnp.zeros((C, cr_pad), jnp.float32).at[:, :Cr].set(
        w1.T.astype(jnp.float32))
    w2t = jnp.zeros((cr_pad, C), jnp.float32).at[:Cr, :].set(
        w2.T.astype(jnp.float32))

    # Pick Bt: largest divisor of B with tile <= ~4 MiB, keeping grid >= 2.
    itemsize = x.dtype.itemsize
    bytes_per_sample = C * HW * itemsize
    target = max(1, (4 << 20) // max(bytes_per_sample, 1))
    cap = max(1, B // 2) if B >= 2 else 1
    if bt is None:
        bt = 1
        for d in range(1, B + 1):
            if B % d == 0 and d <= target and d <= cap:
                bt = d
    assert B % bt == 0
    grid = (B // bt,)

    # VMEM budget: double-buffered input + output tiles + weights + slack.
    tile_bytes = bt * bytes_per_sample
    w_bytes = (w1t.size + w2t.size) * 4
    vmem_limit = int(min(max(4 * tile_bytes + 2 * w_bytes + (4 << 20),
                             32 << 20), 64 << 20))

    out3 = pl.pallas_call(
        se_kernel,
        out_shape=jax.ShapeDtypeStruct((B, C, HW), x.dtype),
        grid_spec=pltpu.PrefetchScalarGridSpec(
            num_scalar_prefetch=0,
            grid=grid,
            in_specs=[
                pl.BlockSpec((bt, C, HW), lambda b: (b, 0, 0)),   # x (lane-dense)
                pl.BlockSpec((C, cr_pad), lambda b: (0, 0)),      # W1^T (padded)
                pl.BlockSpec((cr_pad, C), lambda b: (0, 0)),      # W2^T (padded)
            ],
            out_specs=pl.BlockSpec((bt, C, HW), lambda b: (b, 0, 0)),
        ),
        compiler_params=pltpu.CompilerParams(
            dimension_semantics=("parallel",),
            vmem_limit_bytes=vmem_limit,
        ),
    )(x3, w1t, w2t)
    return out3.reshape(B, C, H, W)


def se_layer_ref(x, w1, w2):
    """Pure-JAX reference matching the PyTorch forward."""
    xf = x.astype(jnp.float32)
    y = jnp.mean(xf, axis=(2, 3))                    # (B, C)
    h = jnp.maximum(
        jnp.dot(y, w1.astype(jnp.float32).T,
                precision=jax.lax.Precision.HIGHEST), 0.0)
    s = jax.nn.sigmoid(
        jnp.dot(h, w2.astype(jnp.float32).T,
                precision=jax.lax.Precision.HIGHEST))
    return (xf * s[:, :, None, None]).astype(x.dtype)


if __name__ == "__main__":
    key = jax.random.PRNGKey(0)
    k_x, k_w1, k_w2 = jax.random.split(key, 3)

    B, C, H, W = 2, 32, 16, 16
    reduction = 16
    Cr = C // reduction

    x = jax.random.normal(k_x, (B, C, H, W), dtype=jnp.float32)
    # Deterministic synthetic weights (Kaiming-uniform-ish scaling).
    w1 = jax.random.uniform(k_w1, (Cr, C), dtype=jnp.float32,
                            minval=-1.0, maxval=1.0) * (1.0 / jnp.sqrt(C))
    w2 = jax.random.uniform(k_w2, (C, Cr), dtype=jnp.float32,
                            minval=-1.0, maxval=1.0) * (1.0 / jnp.sqrt(Cr))

    out = se_layer(x, w1, w2)
    out = jax.block_until_ready(out)

    ref = se_layer_ref(x, w1, w2)
    assert out.shape == (B, C, H, W)
    assert jnp.allclose(out, ref, atol=1e-3, rtol=1e-3), "mismatch vs reference"

    print("KERNEL_OK")
</pallas_src>

<mosaic_0001>
module attributes {stable_mosaic.version = 11 : i64} {
  func.func @se_kernel(%arg0: i32, %arg1: memref<1x32x256xf32, #tpu.memory_space<vmem>>, %arg2: memref<32x128xf32, #tpu.memory_space<vmem>>, %arg3: memref<128x32xf32, #tpu.memory_space<vmem>>, %arg4: memref<1x32x256xf32, #tpu.memory_space<vmem>>) attributes {dimension_semantics = [#tpu.dimension_semantics<parallel>], iteration_bounds = array<i64: 2>, scalar_prefetch = 0 : i64, scratch_operands = 0 : i64, tpu.core_type = #tpu.core_type<tc>, window_params = [{transform_indices = @transform_0, window_bounds = array<i64: 1, 32, 256>}, {pipeline_mode = #tpu.pipeline_mode<synchronous>, transform_indices = @transform_1, window_bounds = array<i64: 32, 128>}, {pipeline_mode = #tpu.pipeline_mode<synchronous>, transform_indices = @transform_2, window_bounds = array<i64: 128, 32>}, {transform_indices = @transform_3, window_bounds = array<i64: 1, 32, 256>}]} {
    %c0 = arith.constant 0 : index
    %c0_0 = arith.constant 0 : index
    %c0_1 = arith.constant 0 : index
    %0 = vector.load %arg1[%c0, %c0_0, %c0_1] : memref<1x32x256xf32, #tpu.memory_space<vmem>>, vector<1x32x256xf32>
    %cst = arith.constant dense<0.000000e+00> : vector<1x32xf32>
    %1 = vector.multi_reduction <add>, %0, %cst [2] : vector<1x32x256xf32> to vector<1x32xf32>
    %cst_2 = arith.constant 3.906250e-03 : f32
    %2 = vector.broadcast %cst_2 : f32 to vector<1x32xf32>
    %3 = arith.mulf %1, %2 : vector<1x32xf32>
    %c0_3 = arith.constant 0 : index
    %c0_4 = arith.constant 0 : index
    %4 = vector.load %arg2[%c0_3, %c0_4] : memref<32x128xf32, #tpu.memory_space<vmem>>, vector<32x128xf32>
    %c0_5 = arith.constant 0 : index
    %c0_6 = arith.constant 0 : index
    %5 = vector.load %arg3[%c0_5, %c0_6] : memref<128x32xf32, #tpu.memory_space<vmem>>, vector<128x32xf32>
    %cst_7 = arith.constant dense<0.000000e+00> : vector<1x128xf32>
    %6 = tpu.matmul %3, %4, %cst_7 {dimension_numbers = #tpu.dot_dimension_numbers<[1], [0], [0], [1], [0, 0, 1, 1], [], []>, precision = #tpu.contract_precision<fp32>} : vector<1x32xf32>, vector<32x128xf32>, vector<1x128xf32> -> vector<1x128xf32>
    %cst_8 = arith.constant 0.000000e+00 : f32
    %7 = vector.broadcast %cst_8 : f32 to vector<1x128xf32>
    %8 = arith.maximumf %6, %7 : vector<1x128xf32>
    %cst_9 = arith.constant dense<0.000000e+00> : vector<1x32xf32>
    %9 = tpu.matmul %8, %5, %cst_9 {dimension_numbers = #tpu.dot_dimension_numbers<[1], [0], [0], [1], [0, 0, 1, 1], [], []>, precision = #tpu.contract_precision<fp32>} : vector<1x128xf32>, vector<128x32xf32>, vector<1x32xf32> -> vector<1x32xf32>
    %cst_10 = arith.constant 0.000000e+00 : f32
    %10 = vector.broadcast %cst_10 : f32 to vector<1x32xf32>
    %11 = arith.subf %10, %9 : vector<1x32xf32>
    %12 = math.exp %11 : vector<1x32xf32>
    %cst_11 = arith.constant 1.000000e+00 : f32
    %13 = vector.broadcast %cst_11 : f32 to vector<1x32xf32>
    %14 = arith.addf %13, %12 : vector<1x32xf32>
    %cst_12 = arith.constant 1.000000e+00 : f32
    %15 = vector.broadcast %cst_12 : f32 to vector<1x32xf32>
    %16 = arith.divf %15, %14 : vector<1x32xf32>
    %17 = vector.shape_cast %16 : vector<1x32xf32> to vector<1x32x1xf32>
    %18 = vector.broadcast %17 : vector<1x32x1xf32> to vector<1x32x256xf32>
    %19 = arith.mulf %0, %18 : vector<1x32x256xf32>
    %c0_13 = arith.constant 0 : index
    %c0_14 = arith.constant 0 : index
    %c0_15 = arith.constant 0 : index
    %20 = vector.load %arg4[%c0_13, %c0_14, %c0_15] : memref<1x32x256xf32, #tpu.memory_space<vmem>>, vector<1x32x256xf32>
    tpu.vector_store %arg4[%c0_13, %c0_14, %c0_15], %19 {strides = array<i32>} : memref<1x32x256xf32, #tpu.memory_space<vmem>>, vector<1x32x256xf32>,
    return
  }
  func.func @transform_0(%arg0: i32) -> (i32, i32, i32) {
    %c0_i32 = arith.constant 0 : i32
    %c0_i32_0 = arith.constant 0 : i32
    %c0_i32_1 = arith.constant 0 : i32
    return %arg0, %c0_i32, %c0_i32_0 : i32, i32, i32
  }
  func.func @transform_1(%arg0: i32) -> (i32, i32) {
    %c0_i32 = arith.constant 0 : i32
    %c0_i32_0 = arith.constant 0 : i32
    %c0_i32_1 = arith.constant 0 : i32
    return %c0_i32, %c0_i32_0 : i32, i32
  }
  func.func @transform_2(%arg0: i32) -> (i32, i32) {
    %c0_i32 = arith.constant 0 : i32
    %c0_i32_0 = arith.constant 0 : i32
    %c0_i32_1 = arith.constant 0 : i32
    return %c0_i32, %c0_i32_0 : i32, i32
  }
  func.func @transform_3(%arg0: i32) -> (i32, i32, i32) {
    %c0_i32 = arith.constant 0 : i32
    %c0_i32_0 = arith.constant 0 : i32
    %c0_i32_1 = arith.constant 0 : i32
    return %arg0, %c0_i32, %c0_i32_0 : i32, i32, i32
  }
}

</mosaic_0001>

<llo_original>
// kernel: tpu_custom_call.1
$region0: #{tpu_custom_call.1}
  #allocation0 [shape = 'u32[]', space=smem, size = 0x4, offset = 0x4, fixed_abs, tag = 'smem constant byte address 0x4 - core index']
  #allocation1 [shape = 'u32[72,128]{1,0:T(1,128)}', space=vmem, size = 0x9000, scoped, tag = 'internal scratch']
  %s0 = inlined_call_operand.vmem [shape: f32[2,32,256], index: 0, kind: input, shape index: {}]
  %s1 = inlined_call_operand.vmem [shape: f32[32,128], index: 1, kind: input, shape index: {}]
  %s2 = inlined_call_operand.vmem [shape: f32[128,32], index: 2, kind: input, shape index: {}]
  %s3 = inlined_call_operand.hbm [shape: f32[2,32,256], index: 3, kind: output, shape index: {}]
  %s4 = sld [smem:[#allocation0]]
  $region45: #{tpu_custom_call.1} parent=0
    _
  %s6 = ssub.s32 1, %s4
  %s7 = scalar_select 0, %s6, %s4
  $region1: #{tpu_custom_call.1} parent=0
    #allocation2 [shape = 'u8[65536]{0}', space=vmem, size = 0x10000, scoped, tag = 'output window, operand 0']
    #allocation3 [shape = 's32[2]{0}', space=sflag, size = 0x8, scoped, tag = 'scoped memory for tpu_custom_call.1']
    %8 = vsyncpa [#allocation3], 0
    %s9 = scalar_lea.sflag [#allocation3], 1
    %10 = vsyncpa %s9, 0
    loop: start=0, step=1, limit=4
    $region2: #{tpu_custom_call.1} parent=1 // loop_pre_header
      _
    $region3: #{tpu_custom_call.1} parent=1 // loop_header
      %s12 = sphi 0, %s16
      %p13 = scmp.ge.s32.totalorder %s12, 4
      %s22 = sphi 0, %s24
      %s25 = sphi 0, %s22
      %s26 = sphi 0, %s25
      %s42 = sphi 0, %s26
      %s46 = sphi 0, %s46
      %s48 = sphi 0, %s46
      %s49 = sphi 0, %s48
      %s63 = sphi 0, %s49
      %s67 = sphi 0, %s67
      %s69 = sphi 0, %s67
      %s70 = sphi 0, %s69
      %s84 = sphi 0, %s70
      %s90 = sphi 0, %s92
      %s93 = sphi 0, %s90
      %s94 = sphi 0, %s93
      %s110 = sphi 0, %s94
    $region4: #{tpu_custom_call.1} parent=1 // loop_header_branch
      %15 = sbr.rel (%p13) target = $region8
    $region5: #{tpu_custom_call.1} parent=1 // loop_body
      %s17 = ssub.s32 %s12, 1
      %s18 = ssub.s32 %s12, 2
      %s19 = sadd.s32 %s12, 1
      %s20 = ssub.s32 %s12, %s19
      %p21 = scmp.eq.s32.totalorder %s20, 0
      %s23 = sadd.s32 %s22, 1
      %s24 = scalar_select %p21, %s22, %s23
      %p27 = pneg %p21
      %p28 = scmp.eq.s32.totalorder %s12, 1
      %p29 = por %p27, %p28
      %p30 = scmp.ne.s32.totalorder %s22, %s25
      %p31 = scmp.eq.s32.totalorder %s12, 0
      %p32 = por %p30, %p31
      %p33 = scmp.ne.s32.totalorder %s22, %s25
      %p34 = scmp.eq.s32.totalorder %s17, 1
      %p35 = por %p33, %p34
      %p36 = scmp.ne.s32.totalorder %s25, %s26
      %p37 = scmp.eq.s32.totalorder %s17, 0
      %p38 = por %p36, %p37
      %p39 = scmp.ne.s32.totalorder %s25, %s26
      %p40 = scmp.eq.s32.totalorder %s18, 1
      %p41 = por %p39, %p40
      %p43 = scmp.ne.s32.totalorder %s26, %s42
      %p44 = scmp.eq.s32.totalorder %s18, 0
      %p45 = por %p43, %p44
      %s47 = sadd.s32 %s46, 1
      %p50 = scmp.eq.s32.totalorder %s12, 1
      %p51 = scmp.ne.s32.totalorder %s46, %s48
      %p52 = scmp.eq.s32.totalorder %s12, 0
      %p53 = por %p51, %p52
      %p54 = scmp.ne.s32.totalorder %s46, %s48
      %p55 = scmp.eq.s32.totalorder %s17, 1
      %p56 = por %p54, %p55
      %p57 = scmp.ne.s32.totalorder %s48, %s49
      %p58 = scmp.eq.s32.totalorder %s17, 0
      %p59 = por %p57, %p58
      %p60 = scmp.ne.s32.totalorder %s48, %s49
      %p61 = scmp.eq.s32.totalorder %s18, 1
      %p62 = por %p60, %p61
      %p64 = scmp.ne.s32.totalorder %s49, %s63
      %p65 = scmp.eq.s32.totalorder %s18, 0
      %p66 = por %p64, %p65
      %s68 = sadd.s32 %s67, 1
      %p71 = scmp.eq.s32.totalorder %s12, 1
      %p72 = scmp.ne.s32.totalorder %s67, %s69
      %p73 = scmp.eq.s32.totalorder %s12, 0
      %p74 = por %p72, %p73
      %p75 = scmp.ne.s32.totalorder %s67, %s69
      %p76 = scmp.eq.s32.totalorder %s17, 1
      %p77 = por %p75, %p76
      %p78 = scmp.ne.s32.totalorder %s69, %s70
      %p79 = scmp.eq.s32.totalorder %s17, 0
      %p80 = por %p78, %p79
      %p81 = scmp.ne.s32.totalorder %s69, %s70
      %p82 = scmp.eq.s32.totalorder %s18, 1
      %p83 = por %p81, %p82
      %p85 = scmp.ne.s32.totalorder %s70, %s84
      %p86 = scmp.eq.s32.totalorder %s18, 0
      %p87 = por %p85, %p86
      %s88 = ssub.s32 %s12, %s19
      %p89 = scmp.eq.s32.totalorder %s88, 0
      %s91 = sadd.s32 %s90, 1
      %s92 = scalar_select %p89, %s90, %s91
      %p95 = pneg %p89
      %p96 = scmp.eq.s32.totalorder %s12, 1
      %p97 = por %p95, %p96
      %p98 = scmp.ne.s32.totalorder %s90, %s93
      %p99 = scmp.eq.s32.totalorder %s12, 0
      %p100 = por %p98, %p99
      %p101 = scmp.ne.s32.totalorder %s90, %s93
      %p102 = scmp.eq.s32.totalorder %s17, 1
      %p103 = por %p101, %p102
      %p104 = scmp.ne.s32.totalorder %s93, %s94
      %p105 = scmp.eq.s32.totalorder %s17, 0
      %p106 = por %p104, %p105
      %p107 = scmp.ne.s32.totalorder %s93, %s94
      %p108 = scmp.eq.s32.totalorder %s18, 1
      %p109 = por %p107, %p108
      %p111 = scmp.ne.s32.totalorder %s94, %s110
      %p112 = scmp.eq.s32.totalorder %s18, 0
      %p113 = por %p111, %p112
      %p114 = scmp.le.s32.totalorder 1, %s12
      %p115 = scmp.lt.s32.totalorder %s12, 3
      %p116 = pnand %p114, %p115
      %p117 = pneg %p116
      // Predicated region
      $region9: #{tpu_custom_call.1} parent=5 // pred_check
        _
      $region10: #{tpu_custom_call.1} parent=5 // pred_check_branch
        %119 = sbr.rel (%p116) target = $region12
      $region11: #{tpu_custom_call.1} parent=5 // pred_region
        %s120 = ssub.s32 %s12, 1
        // Predicated region
        $region13: #{tpu_custom_call.1} parent=11 // pred_check
          %p121 = pneg %p59
        $region14: #{tpu_custom_call.1} parent=11 // pred_check_branch
          %123 = sbr.rel (%p121) target = $region16
        $region15: #{tpu_custom_call.1} parent=11 // pred_region
          _
        $region16: #{tpu_custom_call.1} parent=11 // pred_fallthru
          _
        // Predicated region
        $region17: #{tpu_custom_call.1} parent=11 // pred_check
          %p124 = pneg %p80
        $region18: #{tpu_custom_call.1} parent=11 // pred_check_branch
          %126 = sbr.rel (%p124) target = $region20
        $region19: #{tpu_custom_call.1} parent=11 // pred_region
          _
        $region20: #{tpu_custom_call.1} parent=11 // pred_fallthru
          _
      $region12: #{tpu_custom_call.1} parent=5 // pred_fallthru
        _
      %p127 = scmp.lt.s32.totalorder %s12, 2
      // Predicated region
      $region21: #{tpu_custom_call.1} parent=5 // pred_check
        %p128 = pneg %p127
      $region22: #{tpu_custom_call.1} parent=5 // pred_check_branch
        %130 = sbr.rel (%p128) target = $region24
      $region23: #{tpu_custom_call.1} parent=5 // pred_region
        // Predicated region
        $region25: #{tpu_custom_call.1} parent=23 // pred_check
          %p131 = pneg %p32
        $region26: #{tpu_custom_call.1} parent=23 // pred_check_branch
          %133 = sbr.rel (%p131) target = $region28
        $region27: #{tpu_custom_call.1} parent=23 // pred_region
          %p134 = scmp.lt.s32.totalorder %s12, 1
          %s135 = scalar_select %p134, %s12, 1
          %s136 = smul.addr %s135, 8
          %s137 = smul.addr %s136, 8
          %s138 = scalar_lea.vmem %s0, %s137
        $region28: #{tpu_custom_call.1} parent=23 // pred_fallthru
          _
      $region24: #{tpu_custom_call.1} parent=5 // pred_fallthru
        _
      %p139 = scmp.le.s32.totalorder 1, %s12
      %p140 = scmp.lt.s32.totalorder %s12, 3
      %p141 = pnand %p139, %p140
      %p142 = pneg %p141
      // Predicated region
      $region29: #{tpu_custom_call.1} parent=5 // pred_check
        _
      $region30: #{tpu_custom_call.1} parent=5 // pred_check_branch
        %144 = sbr.rel (%p141) target = $region32
      $region31: #{tpu_custom_call.1} parent=5 // pred_region
        %s145 = ssub.s32 %s12, 1
        %p146 = scmp.lt.s32.totalorder %s17, 1
        %s147 = scalar_select %p146, %s17, 1
        %s148 = smul.addr %s147, 8
        %s149 = smul.addr %s148, 8
        %s150 = scalar_lea.vmem %s0, %s149
        %p151 = pneg %p38
        %p152 = pneg %p35
        %p153 = pneg %p59
        %p154 = pneg %p56
        %p155 = pneg %p80
        %p156 = pneg %p77
        %p157 = pneg %p106
        %p158 = pneg %p103
        %s159 = sand.u32 %s93, 1
        %s160 = scalar_lea.sflag [#allocation3], %s159
        %s161 = sand.u32 %s93, 1
        %s162 = smul.addr %s161, 64
        %s163 = scalar_lea.vmem [#allocation2], %s162
        %p164 = scmp.lt.s32.totalorder %s17, 1
        %s165 = scalar_select %p164, %s17, 1
        %s166 = smul.addr %s165, 8
        %s167 = smul.addr %s166, 8
        %s168 = scalar_lea.vmem %s0, %s167
        %v169 = vld [vmem:[%s168] sm:$0xff]
        %v170 = vld [vmem:[%s168 + $0x8] sm:$0xff]
        %v171 = vld [vmem:[%s168 + $0x10] sm:$0xff]
        %v172 = vld [vmem:[%s168 + $0x18] sm:$0xff]
        %v173 = vld [vmem:[%s168 + $0x20] sm:$0xff]
        %v174 = vld [vmem:[%s168 + $0x28] sm:$0xff]
        %v175 = vld [vmem:[%s168 + $0x30] sm:$0xff]
        %v176 = vld [vmem:[%s168 + $0x38] sm:$0xff]
        %v177 = vadd.f32 %v169, %v170
        %178 = vadd.xlane.f32.xlu0 %v177
        %v179 = vpop.xlane.xlu0 %178
        %v180 = vadd.f32 %v171, %v172
        %181 = vadd.xlane.f32.xlu0 %v180
        %v182 = vpop.xlane.xlu0 %181
        %v183 = vadd.f32 %v173, %v174
        %184 = vadd.xlane.f32.xlu0 %v183
        %v185 = vpop.xlane.xlu0 %184
        %v186 = vadd.f32 %v175, %v176
        %187 = vadd.xlane.f32.xlu0 %v186
        %v188 = vpop.xlane.xlu0 %187
        %v189 = vmul.f32 %v179, 0.00390625
        %v190 = vmul.f32 %v182, 0.00390625
        %v191 = vmul.f32 %v185, 0.00390625
        %v192 = vmul.f32 %v188, 0.00390625
        %v193 = vld [vmem:[%s1] sm:$0xff]
        %v194 = vld [vmem:[%s1 + $0x8] sm:$0xff]
        %v195 = vld [vmem:[%s1 + $0x10] sm:$0xff]
        %v196 = vld [vmem:[%s1 + $0x18] sm:$0xff]
        %v197 = vld [vmem:[%s2] sm:$0xff]
        %v198 = vld [vmem:[%s2 + $0x8] sm:$0xff]
        %v199 = vld [vmem:[%s2 + $0x10] sm:$0xff]
        %v200 = vld [vmem:[%s2 + $0x18] sm:$0xff]
        %v201 = vld [vmem:[%s2 + $0x20] sm:$0xff]
        %v202 = vld [vmem:[%s2 + $0x28] sm:$0xff]
        %v203 = vld [vmem:[%s2 + $0x30] sm:$0xff]
        %v204 = vld [vmem:[%s2 + $0x38] sm:$0xff]
        %v205 = vld [vmem:[%s2 + $0x40] sm:$0xff]
        %v206 = vld [vmem:[%s2 + $0x48] sm:$0xff]
        %v207 = vld [vmem:[%s2 + $0x50] sm:$0xff]
        %v208 = vld [vmem:[%s2 + $0x58] sm:$0xff]
        %v209 = vld [vmem:[%s2 + $0x60] sm:$0xff]
        %v210 = vld [vmem:[%s2 + $0x68] sm:$0xff]
        %v211 = vld [vmem:[%s2 + $0x70] sm:$0xff]
        %v212 = vld [vmem:[%s2 + $0x78] sm:$0xff]
        %v217 = vlaneseq
        %v218 = vand.u32 %v217, 127
        %v219 = vperm.slane %v189, %v218
        %v220 = vadd.s32 %v218, 4294967288
        %v221 = vperm.slane %v190, %v220
        %vm222 = vcmask 130112
        %v223 = vsel %vm222, %v221, %v219
        %v224 = vadd.s32 %v218, 4294967280
        %v225 = vperm.slane %v191, %v224
        %vm226 = vcmask 195712
        %v227 = vsel %vm226, %v225, %v223
        %v228 = vadd.s32 %v218, 4294967272
        %v229 = vperm.slane %v192, %v228
        %vm230 = vcmask 261312
        %v231 = vsel %vm230, %v229, %v227
        %vm232 = vcmask 261120
        %v233 = vsel %vm232, %v231, 0
        %235 = vmatpush.msra.mxu0 0.0
        %236 = vmatpush.msra.mxu0 0.0
        %237 = vmatpush.msra.mxu0 0.0
        %238 = vmatpush.msra.mxu0 0.0
        %239 = vmatpush.msra.mxu0 0.0
        %240 = vmatpush.msra.mxu0 0.0
        %241 = vmatpush.msra.mxu0 0.0
        %242 = vmatpush.msra.mxu0 0.0
        %243 = vmatpush.msra.mxu0 0.0
        %244 = vmatpush.msra.mxu0 0.0
        %245 = vmatpush.msra.mxu0 0.0
        %246 = vmatpush.msra.mxu0 0.0
        %v247 = vand.u32 %v196, 4294901760
        %248 = vmatpush.msra.mxu0 %v247
        %v249 = vand.u32 %v195, 4294901760
        %250 = vmatpush.msra.mxu0 %v249
        %v251 = vand.u32 %v194, 4294901760
        %252 = vmatpush.msra.mxu0 %v251
        %v253 = vand.u32 %v193, 4294901760
        %254 = vmatpush.msra.mxu0 %v253
        %v255 = vand.u32 %v233, 4294901760
        %v256 = vsub.f32 %v233, %v255
        %v257 = vand.u32 %v256, 4294901760
        %v258 = vsub.f32 %v256, %v257
        %v259 = vand.u32 %v258, 4294901760
        %260 = vmatmul.f32.gmra.mxu0 %v259
        %v261 = vpop.f32.mrf.mxu0
        %v262 = vadd.f32 0.0, %v261
        %263 = vdwg.mxu0
        %264 = vmatpush.msra.mxu0 0.0
        %265 = vmatpush.msra.mxu0 0.0
        %266 = vmatpush.msra.mxu0 0.0
        %267 = vmatpush.msra.mxu0 0.0
        %268 = vmatpush.msra.mxu0 0.0
        %269 = vmatpush.msra.mxu0 0.0
        %270 = vmatpush.msra.mxu0 0.0
        %271 = vmatpush.msra.mxu0 0.0
        %272 = vmatpush.msra.mxu0 0.0
        %273 = vmatpush.msra.mxu0 0.0
        %274 = vmatpush.msra.mxu0 0.0
        %275 = vmatpush.msra.mxu0 0.0
        %v276 = vand.u32 %v196, 4294901760
        %v277 = vsub.f32 %v196, %v276
        %v278 = vand.u32 %v277, 4294901760
        %v279 = vsub.f32 %v277, %v278
        %v280 = vand.u32 %v279, 4294901760
        %281 = vmatpush.msra.mxu0 %v280
        %v282 = vand.u32 %v195, 4294901760
        %v283 = vsub.f32 %v195, %v282
        %v284 = vand.u32 %v283, 4294901760
        %v285 = vsub.f32 %v283, %v284
        %v286 = vand.u32 %v285, 4294901760
        %287 = vmatpush.msra.mxu0 %v286
        %v288 = vand.u32 %v194, 4294901760
        %v289 = vsub.f32 %v194, %v288
        %v290 = vand.u32 %v289, 4294901760
        %v291 = vsub.f32 %v289, %v290
        %v292 = vand.u32 %v291, 4294901760
        %293 = vmatpush.msra.mxu0 %v292
        %v294 = vand.u32 %v193, 4294901760
        %v295 = vsub.f32 %v193, %v294
        %v296 = vand.u32 %v295, 4294901760
        %v297 = vsub.f32 %v295, %v296
        %v298 = vand.u32 %v297, 4294901760
        %299 = vmatpush.msra.mxu0 %v298
        %v300 = vand.u32 %v233, 4294901760
        %301 = vmatmul.f32.gmra.mxu0 %v300
        %v302 = vpop.f32.mrf.mxu0
        %v303 = vadd.f32 %v262, %v302
        %304 = vdwg.mxu0
        %305 = vmatpush.msra.mxu0 0.0
        %306 = vmatpush.msra.mxu0 0.0
        %307 = vmatpush.msra.mxu0 0.0
        %308 = vmatpush.msra.mxu0 0.0
        %309 = vmatpush.msra.mxu0 0.0
        %310 = vmatpush.msra.mxu0 0.0
        %311 = vmatpush.msra.mxu0 0.0
        %312 = vmatpush.msra.mxu0 0.0
        %313 = vmatpush.msra.mxu0 0.0
        %314 = vmatpush.msra.mxu0 0.0
        %315 = vmatpush.msra.mxu0 0.0
        %316 = vmatpush.msra.mxu0 0.0
        %v317 = vand.u32 %v196, 4294901760
        %v318 = vsub.f32 %v196, %v317
        %319 = vmatpush.msra.mxu0 %v318
        %v320 = vand.u32 %v195, 4294901760
        %v321 = vsub.f32 %v195, %v320
        %322 = vmatpush.msra.mxu0 %v321
        %v323 = vand.u32 %v194, 4294901760
        %v324 = vsub.f32 %v194, %v323
        %325 = vmatpush.msra.mxu0 %v324
        %v326 = vand.u32 %v193, 4294901760
        %v327 = vsub.f32 %v193, %v326
        %328 = vmatpush.msra.mxu0 %v327
        %v329 = vand.u32 %v233, 4294901760
        %v330 = vsub.f32 %v233, %v329
        %331 = vmatmul.f32.gmra.mxu0 %v330
        %v332 = vpop.f32.mrf.mxu0
        %v333 = vadd.f32 %v303, %v332
        %334 = vdwg.mxu0
        %335 = vmatpush.msra.mxu0 0.0
        %336 = vmatpush.msra.mxu0 0.0
        %337 = vmatpush.msra.mxu0 0.0
        %338 = vmatpush.msra.mxu0 0.0
        %339 = vmatpush.msra.mxu0 0.0
        %340 = vmatpush.msra.mxu0 0.0
        %341 = vmatpush.msra.mxu0 0.0
        %342 = vmatpush.msra.mxu0 0.0
        %343 = vmatpush.msra.mxu0 0.0
        %344 = vmatpush.msra.mxu0 0.0
        %345 = vmatpush.msra.mxu0 0.0
        %346 = vmatpush.msra.mxu0 0.0
        %v347 = vand.u32 %v196, 4294901760
        %348 = vmatpush.msra.mxu0 %v347
        %v349 = vand.u32 %v195, 4294901760
        %350 = vmatpush.msra.mxu0 %v349
        %v351 = vand.u32 %v194, 4294901760
        %352 = vmatpush.msra.mxu0 %v351
        %v353 = vand.u32 %v193, 4294901760
        %354 = vmatpush.msra.mxu0 %v353
        %v355 = vand.u32 %v233, 4294901760
        %v356 = vsub.f32 %v233, %v355
        %v357 = vand.u32 %v356, 4294901760
        %358 = vmatmul.f32.gmra.mxu0 %v357
        %v359 = vpop.f32.mrf.mxu0
        %v360 = vadd.f32 %v333, %v359
        %361 = vdwg.mxu0
        %362 = vmatpush.msra.mxu0 0.0
        %363 = vmatpush.msra.mxu0 0.0
        %364 = vmatpush.msra.mxu0 0.0
        %365 = vmatpush.msra.mxu0 0.0
        %366 = vmatpush.msra.mxu0 0.0
        %367 = vmatpush.msra.mxu0 0.0
        %368 = vmatpush.msra.mxu0 0.0
        %369 = vmatpush.msra.mxu0 0.0
        %370 = vmatpush.msra.mxu0 0.0
        %371 = vmatpush.msra.mxu0 0.0
        %372 = vmatpush.msra.mxu0 0.0
        %373 = vmatpush.msra.mxu0 0.0
        %v374 = vand.u32 %v196, 4294901760
        %v375 = vsub.f32 %v196, %v374
        %v376 = vand.u32 %v375, 4294901760
        %377 = vmatpush.msra.mxu0 %v376
        %v378 = vand.u32 %v195, 4294901760
        %v379 = vsub.f32 %v195, %v378
        %v380 = vand.u32 %v379, 4294901760
        %381 = vmatpush.msra.mxu0 %v380
        %v382 = vand.u32 %v194, 4294901760
        %v383 = vsub.f32 %v194, %v382
        %v384 = vand.u32 %v383, 4294901760
        %385 = vmatpush.msra.mxu0 %v384
        %v386 = vand.u32 %v193, 4294901760
        %v387 = vsub.f32 %v193, %v386
        %v388 = vand.u32 %v387, 4294901760
        %389 = vmatpush.msra.mxu0 %v388
        %v390 = vand.u32 %v233, 4294901760
        %391 = vmatmul.f32.gmra.mxu0 %v390
        %v392 = vpop.f32.mrf.mxu0
        %v393 = vadd.f32 %v360, %v392
        %394 = vdwg.mxu0
        %395 = vmatpush.msra.mxu0 0.0
        %396 = vmatpush.msra.mxu0 0.0
        %397 = vmatpush.msra.mxu0 0.0
        %398 = vmatpush.msra.mxu0 0.0
        %399 = vmatpush.msra.mxu0 0.0
        %400 = vmatpush.msra.mxu0 0.0
        %401 = vmatpush.msra.mxu0 0.0
        %402 = vmatpush.msra.mxu0 0.0
        %403 = vmatpush.msra.mxu0 0.0
        %404 = vmatpush.msra.mxu0 0.0
        %405 = vmatpush.msra.mxu0 0.0
        %406 = vmatpush.msra.mxu0 0.0
        %v407 = vand.u32 %v196, 4294901760
        %408 = vmatpush.msra.mxu0 %v407
        %v409 = vand.u32 %v195, 4294901760
        %410 = vmatpush.msra.mxu0 %v409
        %v411 = vand.u32 %v194, 4294901760
        %412 = vmatpush.msra.mxu0 %v411
        %v413 = vand.u32 %v193, 4294901760
        %414 = vmatpush.msra.mxu0 %v413
        %v415 = vand.u32 %v233, 4294901760
        %416 = vmatmul.f32.gmra.mxu0 %v415
        %v417 = vpop.f32.mrf.mxu0
        %v418 = vadd.f32 %v393, %v417
        %419 = vdwg.mxu0
        %v420 = vmax.f32 %v418, 0.0
        %v421 = vand.u32 %v212, 4294901760
        %422 = vmatpush.msra.mxu0 %v421
        %v423 = vand.u32 %v211, 4294901760
        %424 = vmatpush.msra.mxu0 %v423
        %v425 = vand.u32 %v210, 4294901760
        %426 = vmatpush.msra.mxu0 %v425
        %v427 = vand.u32 %v209, 4294901760
        %428 = vmatpush.msra.mxu0 %v427
        %v429 = vand.u32 %v208, 4294901760
        %430 = vmatpush.msra.mxu0 %v429
        %v431 = vand.u32 %v207, 4294901760
        %432 = vmatpush.msra.mxu0 %v431
        %v433 = vand.u32 %v206, 4294901760
        %434 = vmatpush.msra.mxu0 %v433
        %v435 = vand.u32 %v205, 4294901760
        %436 = vmatpush.msra.mxu0 %v435
        %v437 = vand.u32 %v204, 4294901760
        %438 = vmatpush.msra.mxu0 %v437
        %v439 = vand.u32 %v203, 4294901760
        %440 = vmatpush.msra.mxu0 %v439
        %v441 = vand.u32 %v202, 4294901760
        %442 = vmatpush.msra.mxu0 %v441
        %v443 = vand.u32 %v201, 4294901760
        %444 = vmatpush.msra.mxu0 %v443
        %v445 = vand.u32 %v200, 4294901760
        %446 = vmatpush.msra.mxu0 %v445
        %v447 = vand.u32 %v199, 4294901760
        %448 = vmatpush.msra.mxu0 %v447
        %v449 = vand.u32 %v198, 4294901760
        %450 = vmatpush.msra.mxu0 %v449
        %v451 = vand.u32 %v197, 4294901760
        %452 = vmatpush.msra.mxu0 %v451
        %v453 = vand.u32 %v420, 4294901760
        %v454 = vsub.f32 %v420, %v453
        %v455 = vand.u32 %v454, 4294901760
        %v456 = vsub.f32 %v454, %v455
        %v457 = vand.u32 %v456, 4294901760
        %458 = vmatmul.f32.gmra.mxu0 %v457
        %v459 = vpop.f32.mrf.mxu0
        %v460 = vadd.f32 0.0, %v459
        %461 = vdwg.mxu0
        %v462 = vand.u32 %v212, 4294901760
        %v463 = vsub.f32 %v212, %v462
        %v464 = vand.u32 %v463, 4294901760
        %v465 = vsub.f32 %v463, %v464
        %v466 = vand.u32 %v465, 4294901760
        %467 = vmatpush.msra.mxu0 %v466
        %v468 = vand.u32 %v211, 4294901760
        %v469 = vsub.f32 %v211, %v468
        %v470 = vand.u32 %v469, 4294901760
        %v471 = vsub.f32 %v469, %v470
        %v472 = vand.u32 %v471, 4294901760
        %473 = vmatpush.msra.mxu0 %v472
        %v474 = vand.u32 %v210, 4294901760
        %v475 = vsub.f32 %v210, %v474
        %v476 = vand.u32 %v475, 4294901760
        %v477 = vsub.f32 %v475, %v476
        %v478 = vand.u32 %v477, 4294901760
        %479 = vmatpush.msra.mxu0 %v478
        %v480 = vand.u32 %v209, 4294901760
        %v481 = vsub.f32 %v209, %v480
        %v482 = vand.u32 %v481, 4294901760
        %v483 = vsub.f32 %v481, %v482
        %v484 = vand.u32 %v483, 4294901760
        %485 = vmatpush.msra.mxu0 %v484
        %v486 = vand.u32 %v208, 4294901760
        %v487 = vsub.f32 %v208, %v486
        %v488 = vand.u32 %v487, 4294901760
        %v489 = vsub.f32 %v487, %v488
        %v490 = vand.u32 %v489, 4294901760
        %491 = vmatpush.msra.mxu0 %v490
        %v492 = vand.u32 %v207, 4294901760
        %v493 = vsub.f32 %v207, %v492
        %v494 = vand.u32 %v493, 4294901760
        %v495 = vsub.f32 %v493, %v494
        %v496 = vand.u32 %v495, 4294901760
        %497 = vmatpush.msra.mxu0 %v496
        %v498 = vand.u32 %v206, 4294901760
        %v499 = vsub.f32 %v206, %v498
        %v500 = vand.u32 %v499, 4294901760
        %v501 = vsub.f32 %v499, %v500
        %v502 = vand.u32 %v501, 4294901760
        %503 = vmatpush.msra.mxu0 %v502
        %v504 = vand.u32 %v205, 4294901760
        %v505 = vsub.f32 %v205, %v504
        %v506 = vand.u32 %v505, 4294901760
        %v507 = vsub.f32 %v505, %v506
        %v508 = vand.u32 %v507, 4294901760
        %509 = vmatpush.msra.mxu0 %v508
        %v510 = vand.u32 %v204, 4294901760
        %v511 = vsub.f32 %v204, %v510
        %v512 = vand.u32 %v511, 4294901760
        %v513 = vsub.f32 %v511, %v512
        %v514 = vand.u32 %v513, 4294901760
        %515 = vmatpush.msra.mxu0 %v514
        %v516 = vand.u32 %v203, 4294901760
        %v517 = vsub.f32 %v203, %v516
        %v518 = vand.u32 %v517, 4294901760
        %v519 = vsub.f32 %v517, %v518
        %v520 = vand.u32 %v519, 4294901760
        %521 = vmatpush.msra.mxu0 %v520
        %v522 = vand.u32 %v202, 4294901760
        %v523 = vsub.f32 %v202, %v522
        %v524 = vand.u32 %v523, 4294901760
        %v525 = vsub.f32 %v523, %v524
        %v526 = vand.u32 %v525, 4294901760
        %527 = vmatpush.msra.mxu0 %v526
        %v528 = vand.u32 %v201, 4294901760
        %v529 = vsub.f32 %v201, %v528
        %v530 = vand.u32 %v529, 4294901760
        %v531 = vsub.f32 %v529, %v530
        %v532 = vand.u32 %v531, 4294901760
        %533 = vmatpush.msra.mxu0 %v532
        %v534 = vand.u32 %v200, 4294901760
        %v535 = vsub.f32 %v200, %v534
        %v536 = vand.u32 %v535, 4294901760
        %v537 = vsub.f32 %v535, %v536
        %v538 = vand.u32 %v537, 4294901760
        %539 = vmatpush.msra.mxu0 %v538
        %v540 = vand.u32 %v199, 4294901760
        %v541 = vsub.f32 %v199, %v540
        %v542 = vand.u32 %v541, 4294901760
        %v543 = vsub.f32 %v541, %v542
        %v544 = vand.u32 %v543, 4294901760
        %545 = vmatpush.msra.mxu0 %v544
        %v546 = vand.u32 %v198, 4294901760
        %v547 = vsub.f32 %v198, %v546
        %v548 = vand.u32 %v547, 4294901760
        %v549 = vsub.f32 %v547, %v548
        %v550 = vand.u32 %v549, 4294901760
        %551 = vmatpush.msra.mxu0 %v550
        %v552 = vand.u32 %v197, 4294901760
        %v553 = vsub.f32 %v197, %v552
        %v554 = vand.u32 %v553, 4294901760
        %v555 = vsub.f32 %v553, %v554
        %v556 = vand.u32 %v555, 4294901760
        %557 = vmatpush.msra.mxu0 %v556
        %v558 = vand.u32 %v420, 4294901760
        %559 = vmatmul.f32.gmra.mxu0 %v558
        %v560 = vpop.f32.mrf.mxu0
        %v561 = vadd.f32 %v460, %v560
        %562 = vdwg.mxu0
        %v563 = vand.u32 %v212, 4294901760
        %v564 = vsub.f32 %v212, %v563
        %565 = vmatpush.msra.mxu0 %v564
        %v566 = vand.u32 %v211, 4294901760
        %v567 = vsub.f32 %v211, %v566
        %568 = vmatpush.msra.mxu0 %v567
        %v569 = vand.u32 %v210, 4294901760
        %v570 = vsub.f32 %v210, %v569
        %571 = vmatpush.msra.mxu0 %v570
        %v572 = vand.u32 %v209, 4294901760
        %v573 = vsub.f32 %v209, %v572
        %574 = vmatpush.msra.mxu0 %v573
        %v575 = vand.u32 %v208, 4294901760
        %v576 = vsub.f32 %v208, %v575
        %577 = vmatpush.msra.mxu0 %v576
        %v578 = vand.u32 %v207, 4294901760
        %v579 = vsub.f32 %v207, %v578
        %580 = vmatpush.msra.mxu0 %v579
        %v581 = vand.u32 %v206, 4294901760
        %v582 = vsub.f32 %v206, %v581
        %583 = vmatpush.msra.mxu0 %v582
        %v584 = vand.u32 %v205, 4294901760
        %v585 = vsub.f32 %v205, %v584
        %586 = vmatpush.msra.mxu0 %v585
        %v587 = vand.u32 %v204, 4294901760
        %v588 = vsub.f32 %v204, %v587
        %589 = vmatpush.msra.mxu0 %v588
        %v590 = vand.u32 %v203, 4294901760
        %v591 = vsub.f32 %v203, %v590
        %592 = vmatpush.msra.mxu0 %v591
        %v593 = vand.u32 %v202, 4294901760
        %v594 = vsub.f32 %v202, %v593
        %595 = vmatpush.msra.mxu0 %v594
        %v596 = vand.u32 %v201, 4294901760
        %v597 = vsub.f32 %v201, %v596
        %598 = vmatpush.msra.mxu0 %v597
        %v599 = vand.u32 %v200, 4294901760
        %v600 = vsub.f32 %v200, %v599
        %601 = vmatpush.msra.mxu0 %v600
        %v602 = vand.u32 %v199, 4294901760
        %v603 = vsub.f32 %v199, %v602
        %604 = vmatpush.msra.mxu0 %v603
        %v605 = vand.u32 %v198, 4294901760
        %v606 = vsub.f32 %v198, %v605
        %607 = vmatpush.msra.mxu0 %v606
        %v608 = vand.u32 %v197, 4294901760
        %v609 = vsub.f32 %v197, %v608
        %610 = vmatpush.msra.mxu0 %v609
        %v611 = vand.u32 %v420, 4294901760
        %v612 = vsub.f32 %v420, %v611
        %613 = vmatmul.f32.gmra.mxu0 %v612
        %v614 = vpop.f32.mrf.mxu0
        %v615 = vadd.f32 %v561, %v614
        %616 = vdwg.mxu0
        %v617 = vand.u32 %v212, 4294901760
        %618 = vmatpush.msra.mxu0 %v617
        %v619 = vand.u32 %v211, 4294901760
        %620 = vmatpush.msra.mxu0 %v619
        %v621 = vand.u32 %v210, 4294901760
        %622 = vmatpush.msra.mxu0 %v621
        %v623 = vand.u32 %v209, 4294901760
        %624 = vmatpush.msra.mxu0 %v623
        %v625 = vand.u32 %v208, 4294901760
        %626 = vmatpush.msra.mxu0 %v625
        %v627 = vand.u32 %v207, 4294901760
        %628 = vmatpush.msra.mxu0 %v627
        %v629 = vand.u32 %v206, 4294901760
        %630 = vmatpush.msra.mxu0 %v629
        %v631 = vand.u32 %v205, 4294901760
        %632 = vmatpush.msra.mxu0 %v631
        %v633 = vand.u32 %v204, 4294901760
        %634 = vmatpush.msra.mxu0 %v633
        %v635 = vand.u32 %v203, 4294901760
        %636 = vmatpush.msra.mxu0 %v635
        %v637 = vand.u32 %v202, 4294901760
        %638 = vmatpush.msra.mxu0 %v637
        %v639 = vand.u32 %v201, 4294901760
        %640 = vmatpush.msra.mxu0 %v639
        %v641 = vand.u32 %v200, 4294901760
        %642 = vmatpush.msra.mxu0 %v641
        %v643 = vand.u32 %v199, 4294901760
        %644 = vmatpush.msra.mxu0 %v643
        %v645 = vand.u32 %v198, 4294901760
        %646 = vmatpush.msra.mxu0 %v645
        %v647 = vand.u32 %v197, 4294901760
        %648 = vmatpush.msra.mxu0 %v647
        %v649 = vand.u32 %v420, 4294901760
        %v650 = vsub.f32 %v420, %v649
        %v651 = vand.u32 %v650, 4294901760
        %652 = vmatmul.f32.gmra.mxu0 %v651
        %v653 = vpop.f32.mrf.mxu0
        %v654 = vadd.f32 %v615, %v653
        %655 = vdwg.mxu0
        %v656 = vand.u32 %v212, 4294901760
        %v657 = vsub.f32 %v212, %v656
        %v658 = vand.u32 %v657, 4294901760
        %659 = vmatpush.msra.mxu0 %v658
        %v660 = vand.u32 %v211, 4294901760
        %v661 = vsub.f32 %v211, %v660
        %v662 = vand.u32 %v661, 4294901760
        %663 = vmatpush.msra.mxu0 %v662
        %v664 = vand.u32 %v210, 4294901760
        %v665 = vsub.f32 %v210, %v664
        %v666 = vand.u32 %v665, 4294901760
        %667 = vmatpush.msra.mxu0 %v666
        %v668 = vand.u32 %v209, 4294901760
        %v669 = vsub.f32 %v209, %v668
        %v670 = vand.u32 %v669, 4294901760
        %671 = vmatpush.msra.mxu0 %v670
        %v672 = vand.u32 %v208, 4294901760
        %v673 = vsub.f32 %v208, %v672
        %v674 = vand.u32 %v673, 4294901760
        %675 = vmatpush.msra.mxu0 %v674
        %v676 = vand.u32 %v207, 4294901760
        %v677 = vsub.f32 %v207, %v676
        %v678 = vand.u32 %v677, 4294901760
        %679 = vmatpush.msra.mxu0 %v678
        %v680 = vand.u32 %v206, 4294901760
        %v681 = vsub.f32 %v206, %v680
        %v682 = vand.u32 %v681, 4294901760
        %683 = vmatpush.msra.mxu0 %v682
        %v684 = vand.u32 %v205, 4294901760
        %v685 = vsub.f32 %v205, %v684
        %v686 = vand.u32 %v685, 4294901760
        %687 = vmatpush.msra.mxu0 %v686
        %v688 = vand.u32 %v204, 4294901760
        %v689 = vsub.f32 %v204, %v688
        %v690 = vand.u32 %v689, 4294901760
        %691 = vmatpush.msra.mxu0 %v690
        %v692 = vand.u32 %v203, 4294901760
        %v693 = vsub.f32 %v203, %v692
        %v694 = vand.u32 %v693, 4294901760
        %695 = vmatpush.msra.mxu0 %v694
        %v696 = vand.u32 %v202, 4294901760
        %v697 = vsub.f32 %v202, %v696
        %v698 = vand.u32 %v697, 4294901760
        %699 = vmatpush.msra.mxu0 %v698
        %v700 = vand.u32 %v201, 4294901760
        %v701 = vsub.f32 %v201, %v700
        %v702 = vand.u32 %v701, 4294901760
        %703 = vmatpush.msra.mxu0 %v702
        %v704 = vand.u32 %v200, 4294901760
        %v705 = vsub.f32 %v200, %v704
        %v706 = vand.u32 %v705, 4294901760
        %707 = vmatpush.msra.mxu0 %v706
        %v708 = vand.u32 %v199, 4294901760
        %v709 = vsub.f32 %v199, %v708
        %v710 = vand.u32 %v709, 4294901760
        %711 = vmatpush.msra.mxu0 %v710
        %v712 = vand.u32 %v198, 4294901760
        %v713 = vsub.f32 %v198, %v712
        %v714 = vand.u32 %v713, 4294901760
        %715 = vmatpush.msra.mxu0 %v714
        %v716 = vand.u32 %v197, 4294901760
        %v717 = vsub.f32 %v197, %v716
        %v718 = vand.u32 %v717, 4294901760
        %719 = vmatpush.msra.mxu0 %v718
        %v720 = vand.u32 %v420, 4294901760
        %721 = vmatmul.f32.gmra.mxu0 %v720
        %v722 = vpop.f32.mrf.mxu0
        %v723 = vadd.f32 %v654, %v722
        %724 = vdwg.mxu0
        %v725 = vand.u32 %v212, 4294901760
        %726 = vmatpush.msra.mxu0 %v725
        %v727 = vand.u32 %v211, 4294901760
        %728 = vmatpush.msra.mxu0 %v727
        %v729 = vand.u32 %v210, 4294901760
        %730 = vmatpush.msra.mxu0 %v729
        %v731 = vand.u32 %v209, 4294901760
        %732 = vmatpush.msra.mxu0 %v731
        %v733 = vand.u32 %v208, 4294901760
        %734 = vmatpush.msra.mxu0 %v733
        %v735 = vand.u32 %v207, 4294901760
        %736 = vmatpush.msra.mxu0 %v735
        %v737 = vand.u32 %v206, 4294901760
        %738 = vmatpush.msra.mxu0 %v737
        %v739 = vand.u32 %v205, 4294901760
        %740 = vmatpush.msra.mxu0 %v739
        %v741 = vand.u32 %v204, 4294901760
        %742 = vmatpush.msra.mxu0 %v741
        %v743 = vand.u32 %v203, 4294901760
        %744 = vmatpush.msra.mxu0 %v743
        %v745 = vand.u32 %v202, 4294901760
        %746 = vmatpush.msra.mxu0 %v745
        %v747 = vand.u32 %v201, 4294901760
        %748 = vmatpush.msra.mxu0 %v747
        %v749 = vand.u32 %v200, 4294901760
        %750 = vmatpush.msra.mxu0 %v749
        %v751 = vand.u32 %v199, 4294901760
        %752 = vmatpush.msra.mxu0 %v751
        %v753 = vand.u32 %v198, 4294901760
        %754 = vmatpush.msra.mxu0 %v753
        %v755 = vand.u32 %v197, 4294901760
        %756 = vmatpush.msra.mxu0 %v755
        %v757 = vand.u32 %v420, 4294901760
        %758 = vmatmul.f32.gmra.mxu0 %v757
        %v759 = vpop.f32.mrf.mxu0
        %v760 = vadd.f32 %v723, %v759
        %761 = vdwg.mxu0
        %v762 = vsub.f32 0.0, %v760
        %v763 = vmul.f32 %v762, 1.442695
        %v764 = vpow.pop %v763
        %v765 = vadd.f32 %v764, 1.0
        %v766 = vrcp.pop %v765
        %v767 = vmul.f32 %v765, %v766
        %v768 = vsub.f32 1.0, %v767
        %v769 = vmul.f32 %v766, %v768
        %v770 = vadd.f32 %v766, %v769
        %vm771 = vweird.f32 %v765
        %vm772 = vweird.f32 %v766
        %vm773 = vmor %vm771, %vm772
        %v774 = vsel %vm773, %v766, %v770
        %v775 = vand.u32 2147483647, %v765
        %vm776 = vcmp.eq.f32.partialorder %v775, 8.507059e+37
        %v777 = vand.u32 %v765, 2147483648
        %v778 = vor.u32 1.1754944e-38, %v777
        %v779 = vsel %vm776, %v778, %v774
        %v780 = vmul.f32 1.0, %v779
        %v781 = vperm.slane %v780, 0
        %v782 = vlaneseq
        %v783 = vshrl.u32 %v782, 7
        %785 = vset.pattern.permute.xlu0 %v783
        %786 = vperm.xlu0 %785, %v781
        %v787 = vpop.permute.xlu0 %786
        %v788 = vlaneseq
        %v789 = vshrl.u32 %v788, 7
        %v790 = vadd.s32 %v789, 8
        %791 = vset.pattern.permute.xlu0 %v790
        %792 = vperm.xlu0 %791, %v781
        %v793 = vpop.permute.xlu0 %792
        %v794 = vlaneseq
        %v795 = vshrl.u32 %v794, 7
        %v796 = vadd.s32 %v795, 16
        %797 = vset.pattern.permute.xlu0 %v796
        %798 = vperm.xlu0 %797, %v781
        %v799 = vpop.permute.xlu0 %798
        %v800 = vlaneseq
        %v801 = vshrl.u32 %v800, 7
        %v802 = vadd.s32 %v801, 24
        %803 = vset.pattern.permute.xlu0 %v802
        %804 = vperm.xlu0 %803, %v781
        %v805 = vpop.permute.xlu0 %804
        %v806 = vmul.f32 %v169, %v787
        %v807 = vmul.f32 %v170, %v787
        %v808 = vmul.f32 %v171, %v793
        %v809 = vmul.f32 %v172, %v793
        %v810 = vmul.f32 %v173, %v799
        %v811 = vmul.f32 %v174, %v799
        %v812 = vmul.f32 %v175, %v805
        %v813 = vmul.f32 %v176, %v805
        %814 = vst [vmem:[%s163] sm:$0xff] %v806
        %815 = vst [vmem:[%s163 + $0x8] sm:$0xff] %v807
        %816 = vst [vmem:[%s163 + $0x10] sm:$0xff] %v808
        %817 = vst [vmem:[%s163 + $0x18] sm:$0xff] %v809
        %818 = vst [vmem:[%s163 + $0x20] sm:$0xff] %v810
        %819 = vst [vmem:[%s163 + $0x28] sm:$0xff] %v811
        %820 = vst [vmem:[%s163 + $0x30] sm:$0xff] %v812
        %821 = vst [vmem:[%s163 + $0x38] sm:$0xff] %v813
        %s822 = sand.u32 %s93, 1
        %s823 = scalar_lea.sflag [#allocation3], %s822
        %s824 = sand.u32 %s93, 1
        %s825 = smul.addr %s824, 64
        %s826 = scalar_lea.vmem [#allocation2], %s825
        // Predicated region
        $region33: #{tpu_custom_call.1} parent=31 // pred_check
          %p827 = pneg %p103
        $region34: #{tpu_custom_call.1} parent=31 // pred_check_branch
          %829 = sbr.rel (%p827) target = $region36
        $region35: #{tpu_custom_call.1} parent=31 // pred_region
          %831 = vsyncadd %s823, 0
          %s832 = smul.addr %s17, 8
          %s833 = smul.addr %s832, 8
          %s834 = scalar_lea.hbm %s3, %s833
          %s835 = sshll.u32 %s826, 4
          %s836 = int_to_ptr.vmem [resolvable:$true] %s835
          %s837 = sshll.u32 %s834, 4
          %s838 = int_to_ptr.hbm [resolvable:$true] %s837
          %843 = dma.vmem_to_hbm [thread:$0]  %s836, 1024, %s838, %s823, 256, 256, 16
        $region36: #{tpu_custom_call.1} parent=31 // pred_fallthru
          _
      $region32: #{tpu_custom_call.1} parent=5 // pred_fallthru
        _
      %p844 = scmp.le.s32.totalorder 2, %s12
      // Predicated region
      $region37: #{tpu_custom_call.1} parent=5 // pred_check
        %p845 = pneg %p844
      $region38: #{tpu_custom_call.1} parent=5 // pred_check_branch
        %847 = sbr.rel (%p845) target = $region40
      $region39: #{tpu_custom_call.1} parent=5 // pred_region
        %s848 = ssub.s32 %s12, 2
        // Predicated region
        $region41: #{tpu_custom_call.1} parent=39 // pred_check
          %p849 = pneg %p109
        $region42: #{tpu_custom_call.1} parent=39 // pred_check_branch
          %851 = sbr.rel (%p849) target = $region44
        $region43: #{tpu_custom_call.1} parent=39 // pred_region
          %s852 = sand.u32 %s94, 1
          %s853 = scalar_lea.sflag [#allocation3], %s852
          %s854 = sand.u32 %s94, 1
          %s855 = smul.addr %s854, 64
          %s856 = scalar_lea.vmem [#allocation2], %s855
          %858 = dma.done %s853, 1024
        $region44: #{tpu_custom_call.1} parent=39 // pred_fallthru
          _
      $region40: #{tpu_custom_call.1} parent=5 // pred_fallthru
        _
    $region6: #{tpu_custom_call.1} parent=1 // loop_footer
      %s16 = sadd.s32 1, %s12
    $region7: #{tpu_custom_call.1} parent=1 // loop_footer_branch
      %11 = sbr.rel target = $region3
    $region8: #{tpu_custom_call.1} parent=1 // loop_exit
      _
    %859 = vsyncpa [#allocation3], 1
    %s860 = scalar_lea.sflag [#allocation3], 1
    %861 = vsyncpa %s860, 1

</llo_original>
